<compile_context>
chip_gen: v7x
topology: tpu7x:2x2x1
jax: 0.10.0
libtpu: 0.0.40
codegen_flags: <defaults>
</compile_context>

<pallas_src>
import functools

import jax
import jax.numpy as jnp
from jax.experimental import pallas as pl
from jax.experimental.pallas import tpu as pltpu


def _round_up(x, m):
    return (x + m - 1) // m * m


def _prefers_256_tiles():
    # v6e / v7x have 256-wide MXUs; v2-v5 are 128-wide.
    try:
        kind = jax.devices()[0].device_kind.lower()
    except Exception:
        return False
    return not any(v in kind for v in ("v2", "v3", "v4", "v5"))


_PREFER_256 = _prefers_256_tiles()
_VMEM_LIMIT = 32 * 1024 * 1024  # safe on v5e/v6e (128 MiB) and v7x (64 MiB)


# ----------------------------------------------------------------------------
# Tiled GEMM kernel with fused bias (+ optional residual) + optional ReLU
# ----------------------------------------------------------------------------
def _gemm_kernel(a_ref, b_ref, bias_ref, o_ref, acc_ref, *, relu):
    @pl.when(pl.program_id(2) == 0)
    def _():
        acc_ref[...] = jnp.zeros_like(acc_ref)

    acc_ref[...] += jnp.dot(a_ref[...], b_ref[...],
                            preferred_element_type=jnp.float32)

    @pl.when(pl.program_id(2) == pl.num_programs(2) - 1)
    def _():
        y = acc_ref[...] + bias_ref[...]
        if relu:
            y = jnp.maximum(y, 0.0)
        o_ref[...] = y.astype(o_ref.dtype)


def _gemm_res_kernel(a_ref, b_ref, bias_ref, res_ref, o_ref, acc_ref, *, relu):
    @pl.when(pl.program_id(2) == 0)
    def _():
        acc_ref[...] = jnp.zeros_like(acc_ref)

    acc_ref[...] += jnp.dot(a_ref[...], b_ref[...],
                            preferred_element_type=jnp.float32)

    @pl.when(pl.program_id(2) == pl.num_programs(2) - 1)
    def _():
        y = acc_ref[...] + bias_ref[...] + res_ref[...]
        if relu:
            y = jnp.maximum(y, 0.0)
        o_ref[...] = y.astype(o_ref.dtype)


def gemm_bias_act(a, w, bias, *, relu, residual=None):
    """out[:M,:N] = act(a @ w + bias (+ residual)).

    a: (M, K) (cast to bf16), w: (K, N) bf16 (BN scale pre-folded),
    bias: (1, N) f32, residual: optional (M, N) f32 added before ReLU.
    """
    M, K = a.shape
    K2, Nout = w.shape
    assert K == K2

    Kp = _round_up(K, 128)
    Np = _round_up(Nout, 128)
    tn = 256 if (_PREFER_256 and Np % 256 == 0) else 128
    tk = 256 if (_PREFER_256 and Kp % 256 == 0) else 128
    tm = 256 if M >= 256 else _round_up(M, 16)
    Mp = _round_up(M, tm)

    a_p = a.astype(jnp.bfloat16)
    if Mp != M or Kp != K:
        a_p = jnp.pad(a_p, ((0, Mp - M), (0, Kp - K)))
    w_p = w.astype(jnp.bfloat16)
    if Kp != K or Np != Nout:
        w_p = jnp.pad(w_p, ((0, Kp - K), (0, Np - Nout)))
    b_p = bias.astype(jnp.float32)
    if Np != Nout:
        b_p = jnp.pad(b_p, ((0, 0), (0, Np - Nout)))

    in_specs = [
        pl.BlockSpec((tm, tk), lambda i, j, k: (i, k)),
        pl.BlockSpec((tk, tn), lambda i, j, k: (k, j)),
        pl.BlockSpec((1, tn), lambda i, j, k: (0, j)),
    ]
    args = [a_p, w_p, b_p]
    if residual is not None:
        r_p = residual.astype(jnp.float32)
        if Mp != M or Np != Nout:
            r_p = jnp.pad(r_p, ((0, Mp - M), (0, Np - Nout)))
        in_specs.append(pl.BlockSpec((tm, tn), lambda i, j, k: (i, j)))
        args.append(r_p)
        kern = functools.partial(_gemm_res_kernel, relu=relu)
    else:
        kern = functools.partial(_gemm_kernel, relu=relu)

    out = pl.pallas_call(
        kern,
        out_shape=jax.ShapeDtypeStruct((Mp, Np), jnp.float32),
        grid_spec=pltpu.PrefetchScalarGridSpec(
            num_scalar_prefetch=0,
            grid=(Mp // tm, Np // tn, Kp // tk),
            in_specs=in_specs,
            out_specs=pl.BlockSpec((tm, tn), lambda i, j, k: (i, j)),
            scratch_shapes=[pltpu.VMEM((tm, tn), jnp.float32)],
        ),
        compiler_params=pltpu.CompilerParams(
            dimension_semantics=("parallel", "parallel", "arbitrary"),
            vmem_limit_bytes=_VMEM_LIMIT),
    )(*args)
    if Mp != M or Np != Nout:
        out = out[:M, :Nout]
    return out


# ----------------------------------------------------------------------------
# Row-tiled element-wise kernels: 9-way max (pool) and selective sigmoid head
# ----------------------------------------------------------------------------
def _max_tree_kernel(*refs):
    ins, o_ref = refs[:-1], refs[-1]
    vals = [r[...] for r in ins]
    while len(vals) > 1:                       # pairwise VPU maximum tree
        nxt = [jnp.maximum(vals[i], vals[i + 1])
               for i in range(0, len(vals) - 1, 2)]
        if len(vals) % 2:
            nxt.append(vals[-1])
        vals = nxt
    o_ref[...] = vals[0]


def maxpool_3x3_s2(x):
    """3x3 max-pool, stride 2, pad 1 (NHWC).  The 9 shifted window views are
    passed as separate lane-dense slabs; the 9-way max is a VPU maximum tree
    in a row-tiled Pallas kernel (no stacked (M, 9, C) intermediate)."""
    N, H, W, C = x.shape
    Ho = (H + 2 - 3) // 2 + 1
    Wo = (W + 2 - 3) // 2 + 1
    xp = jnp.pad(x, ((0, 0), (1, 1), (1, 1), (0, 0)),
                 constant_values=float("-inf"))
    total = N * Ho * Wo * C
    L = 128 if total % 128 == 0 else C         # lane-dense view when possible
    R = total // L
    tr = min(512, _round_up(R, 8))
    Rp = _round_up(R, tr)
    slabs = []
    for i in range(3):
        for j in range(3):
            s = xp[:, i:i + 2 * (Ho - 1) + 1:2,
                   j:j + 2 * (Wo - 1) + 1:2, :].reshape(R, L)
            if Rp != R:
                s = jnp.pad(s, ((0, Rp - R), (0, 0)))
            slabs.append(s)
    out = pl.pallas_call(
        _max_tree_kernel,
        out_shape=jax.ShapeDtypeStruct((Rp, L), jnp.float32),
        grid=(Rp // tr,),
        in_specs=[pl.BlockSpec((tr, L), lambda i: (i, 0)) for _ in range(9)],
        out_specs=pl.BlockSpec((tr, L), lambda i: (i, 0)),
        compiler_params=pltpu.CompilerParams(
            dimension_semantics=("parallel",),
            vmem_limit_bytes=_VMEM_LIMIT),
    )(*slabs)
    if Rp != R:
        out = out[:R]
    return out.reshape(N, Ho, Wo, C)


def _sigmoid_tail_kernel(x_ref, o_ref, *, split):
    v = x_ref[...]
    col = jax.lax.broadcasted_iota(jnp.int32, v.shape, 1)
    sig = 1.0 / (1.0 + jnp.exp(-v))
    o_ref[...] = jnp.where(col >= split, sig, v)


def sigmoid_tail(x, split):
    """out[:, split:] = sigmoid(out[:, split:]) — matches the PyTorch head."""
    M, N = x.shape
    Np = _round_up(N, 128)
    tr = min(512, _round_up(M, 8))
    Mp = _round_up(M, tr)
    xp = jnp.pad(x, ((0, Mp - M), (0, Np - N)))
    out = pl.pallas_call(
        functools.partial(_sigmoid_tail_kernel, split=split),
        out_shape=jax.ShapeDtypeStruct((Mp, Np), jnp.float32),
        grid=(Mp // tr,),
        in_specs=[pl.BlockSpec((tr, Np), lambda i: (i, 0))],
        out_specs=pl.BlockSpec((tr, Np), lambda i: (i, 0)),
        compiler_params=pltpu.CompilerParams(
            dimension_semantics=("parallel",),
            vmem_limit_bytes=_VMEM_LIMIT),
    )(xp)
    return out[:M, :N]


# ----------------------------------------------------------------------------
# Convolution = im2col (bf16, glue) + Pallas GEMM (hot path)
# ----------------------------------------------------------------------------
def conv_bn(x, w_hwio, bias, stride, pad, relu, residual=None):
    """x: NHWC f32.  w_hwio: (kh,kw,cin,cout) bf16 with BN scale folded in.
    bias: (1, cout) f32 folded BN bias.  residual (NHWC) is added before the
    ReLU inside the GEMM epilogue."""
    # TODO(synk): fold the kh*kw taps directly into the GEMM K grid axis
    # (shifted-window index_map) to avoid materializing im2col in HBM for
    # 3x3/7x7 convs; in the meantime cols are built in bf16 to halve traffic.
    N, H, W, Cin = x.shape
    kh, kw, _, Cout = w_hwio.shape
    Ho = (H + 2 * pad - kh) // stride + 1
    Wo = (W + 2 * pad - kw) // stride + 1
    xb = x.astype(jnp.bfloat16)
    xp = jnp.pad(xb, ((0, 0), (pad, pad), (pad, pad), (0, 0))) if pad else xb
    if kh == 1 and kw == 1:
        cols = xp[:, :stride * (Ho - 1) + 1:stride,
                  :stride * (Wo - 1) + 1:stride, :]
        cols = cols.reshape(N * Ho * Wo, Cin)
    else:
        pats = []
        for i in range(kh):
            for j in range(kw):
                pats.append(xp[:, i:i + stride * (Ho - 1) + 1:stride,
                               j:j + stride * (Wo - 1) + 1:stride, :])
        cols = jnp.concatenate(pats, axis=-1).reshape(N * Ho * Wo, kh * kw * Cin)
    res2d = None
    if residual is not None:
        res2d = residual.reshape(N * Ho * Wo, Cout)
    out = gemm_bias_act(cols, w_hwio.reshape(kh * kw * Cin, Cout), bias,
                        relu=relu, residual=res2d)
    return out.reshape(N, Ho, Wo, Cout)


def bottleneck(x, bp, stride):
    if "wd" in bp:
        identity = conv_bn(x, bp["wd"], bp["bd"], stride, 0, relu=False)
    else:
        identity = x
    out = conv_bn(x, bp["w1"], bp["b1"], 1, 0, relu=True)
    out = conv_bn(out, bp["w2"], bp["b2"], stride, 1, relu=True)
    # conv3: BN bias + residual add + ReLU fused into the GEMM epilogue.
    out = conv_bn(out, bp["w3"], bp["b3"], 1, 0, relu=True, residual=identity)
    return out


# ----------------------------------------------------------------------------
# Deterministic parameter construction (ResNet-50 shapes, BN folded, bf16 W)
# ----------------------------------------------------------------------------
class _Rng:
    def __init__(self, seed):
        self.key = jax.random.PRNGKey(seed)

    def next(self):
        self.key, sub = jax.random.split(self.key)
        return sub


def _make_conv(rng, kh, kw, cin, cout):
    std = (2.0 / (kh * kw * cin)) ** 0.5
    return (std * jax.random.normal(rng.next(), (kh, kw, cin, cout))
            ).astype(jnp.float32)


def _make_bn(rng, c, eps=1e-5):
    gamma = 1.0 + 0.1 * jax.random.normal(rng.next(), (c,))
    beta = 0.1 * jax.random.normal(rng.next(), (c,))
    mean = 0.1 * jax.random.normal(rng.next(), (c,))
    var = jax.random.uniform(rng.next(), (c,), minval=0.5, maxval=1.5)
    s = gamma / jnp.sqrt(var + eps)
    b = beta - mean * s
    return s.astype(jnp.float32), b.astype(jnp.float32)


def make_params(seed, num_categorical, num_continuous):
    # TODO(synk): torchvision pretrained=True weights are replaced by
    # deterministic random init (no checkpoint loading in this synthetic kernel).
    rng = _Rng(seed)

    def conv_bn_params(kh, kw, cin, cout):
        w = _make_conv(rng, kh, kw, cin, cout)
        s, b = _make_bn(rng, cout)
        w_folded = (w * s[None, None, None, :]).astype(jnp.bfloat16)
        return w_folded, b.reshape(1, cout).astype(jnp.float32)

    p = {}
    p["conv1"], p["bn1_b"] = conv_bn_params(7, 7, 3, 64)
    cfg = [(64, 3), (128, 4), (256, 6), (512, 3)]   # resnet50: [3,4,6,3]
    in_c = 64
    p["layers"] = []
    for li, (planes, blocks) in enumerate(cfg):
        layer = []
        for bi in range(blocks):
            stride = 2 if (li > 0 and bi == 0) else 1
            bp = {}
            bp["w1"], bp["b1"] = conv_bn_params(1, 1, in_c, planes)
            bp["w2"], bp["b2"] = conv_bn_params(3, 3, planes, planes)
            bp["w3"], bp["b3"] = conv_bn_params(1, 1, planes, planes * 4)
            if stride != 1 or in_c != planes * 4:
                bp["wd"], bp["bd"] = conv_bn_params(1, 1, in_c, planes * 4)
            layer.append(bp)
            in_c = planes * 4
        p["layers"].append(layer)
    out_dim = num_categorical + 2 * num_continuous
    p["fc_w"] = ((1.0 / 2048 ** 0.5) *
                 jax.random.normal(rng.next(), (2048, out_dim))
                 ).astype(jnp.bfloat16)
    p["fc_b"] = (0.01 * jax.random.normal(rng.next(), (1, out_dim))
                 ).astype(jnp.float32)
    return p


# ----------------------------------------------------------------------------
# MResNet forward (ResNet-50 backbone + custom head)
# ----------------------------------------------------------------------------
@functools.partial(jax.jit, static_argnums=(2,))
def mresnet_forward(x_nchw, params, num_continuous):
    x = jnp.transpose(x_nchw, (0, 2, 3, 1)).astype(jnp.float32)  # NCHW -> NHWC
    x = conv_bn(x, params["conv1"], params["bn1_b"], 2, 3, relu=True)
    x = maxpool_3x3_s2(x)
    for li, layer in enumerate(params["layers"]):
        for bi, bp in enumerate(layer):
            stride = 2 if (li > 0 and bi == 0) else 1
            x = bottleneck(x, bp, stride)
    N, H, W, C = x.shape
    feat = jnp.mean(x.reshape(N, H * W, C), axis=1)   # adaptive avg-pool (glue)
    logits = gemm_bias_act(feat, params["fc_w"], params["fc_b"], relu=False)
    return sigmoid_tail(logits, split=2 * num_continuous)


if __name__ == "__main__":
    # --- small unit check of the fused GEMM against an XLA reference --------
    k1, k2, k3, k4 = jax.random.split(jax.random.PRNGKey(1), 4)
    a_t = jax.random.normal(k1, (200, 300), jnp.float32).astype(jnp.bfloat16)
    w_t = (0.1 * jax.random.normal(k2, (300, 120), jnp.float32)).astype(jnp.bfloat16)
    b_t = 0.1 * jax.random.normal(k3, (1, 120), jnp.float32)
    r_t = jax.random.normal(k4, (200, 120), jnp.float32)
    got = gemm_bias_act(a_t, w_t, b_t, relu=True, residual=r_t)
    ref = jnp.maximum(
        jnp.dot(a_t.astype(jnp.float32), w_t.astype(jnp.float32),
                precision=jax.lax.Precision.HIGHEST) + b_t + r_t, 0.0)
    assert bool(jnp.allclose(got, ref, rtol=1e-4, atol=1e-3))

    # --- full forward --------------------------------------------------------
    num_categorical, num_continuous = 4, 3
    params = make_params(0, num_categorical, num_continuous)
    x = jax.random.normal(jax.random.PRNGKey(0), (2, 3, 32, 32), dtype=jnp.float32)
    out = jax.block_until_ready(mresnet_forward(x, params, num_continuous))
    assert out.shape == (2, num_categorical + 2 * num_continuous)
    assert bool(jnp.all(jnp.isfinite(out)))
    # Columns >= 2*num_continuous went through sigmoid -> must lie in [0, 1]
    # (inclusive: with random-init weights the logits can saturate sigmoid to
    # exactly 0.0/1.0 in float32, same as torch.sigmoid would).
    tail = out[:, 2 * num_continuous:]
    assert bool(jnp.all((tail >= 0.0) & (tail <= 1.0)))
    print("KERNEL_OK")
</pallas_src>

<mosaic_0001>
module attributes {stable_mosaic.version = 11 : i64} {
  func.func @_gemm_res_kernel(%arg0: i32, %arg1: i32, %arg2: i32, %arg3: memref<208x128xbf16, #tpu.memory_space<vmem>>, %arg4: memref<128x128xbf16, #tpu.memory_space<vmem>>, %arg5: memref<1x128xf32, #tpu.memory_space<vmem>>, %arg6: memref<208x128xf32, #tpu.memory_space<vmem>>, %arg7: memref<208x128xf32, #tpu.memory_space<vmem>>, %arg8: memref<208x128xf32, #tpu.memory_space<vmem>>) attributes {dimension_semantics = [#tpu.dimension_semantics<parallel>, #tpu.dimension_semantics<parallel>, #tpu.dimension_semantics<arbitrary>], iteration_bounds = array<i64: 1, 1, 3>, scalar_prefetch = 0 : i64, scratch_operands = 1 : i64, tpu.core_type = #tpu.core_type<tc>, window_params = [{transform_indices = @transform_0, window_bounds = array<i64: 208, 128>}, {transform_indices = @transform_1, window_bounds = array<i64: 128, 128>}, {transform_indices = @transform_2, window_bounds = array<i64: 1, 128>}, {transform_indices = @transform_3, window_bounds = array<i64: 208, 128>}, {transform_indices = @transform_4, window_bounds = array<i64: 208, 128>}]} {
    %c0_i32 = arith.constant 0 : i32
    %0 = arith.cmpi eq, %arg2, %c0_i32 : i32
    %1 = arith.extui %0 : i1 to i32
    %c0_i32_0 = arith.constant 0 : i32
    %2 = arith.cmpi ne, %1, %c0_i32_0 : i32
    scf.if %2 {
      %cst_9 = arith.constant 0.000000e+00 : f32
      %12 = vector.broadcast %cst_9 : f32 to vector<208x128xf32>
      %c0_10 = arith.constant 0 : index
      %c0_11 = arith.constant 0 : index
      %13 = vector.load %arg8[%c0_10, %c0_11] : memref<208x128xf32, #tpu.memory_space<vmem>>, vector<208x128xf32>
      tpu.vector_store %arg8[%c0_10, %c0_11], %12 {strides = array<i32>} : memref<208x128xf32, #tpu.memory_space<vmem>>, vector<208x128xf32>,
    } else {
    }
    %c0 = arith.constant 0 : index
    %c0_1 = arith.constant 0 : index
    %3 = vector.load %arg8[%c0, %c0_1] : memref<208x128xf32, #tpu.memory_space<vmem>>, vector<208x128xf32>
    %c0_2 = arith.constant 0 : index
    %c0_3 = arith.constant 0 : index
    %4 = vector.load %arg3[%c0_2, %c0_3] : memref<208x128xbf16, #tpu.memory_space<vmem>>, vector<208x128xbf16>
    %c0_4 = arith.constant 0 : index
    %c0_5 = arith.constant 0 : index
    %5 = vector.load %arg4[%c0_4, %c0_5] : memref<128x128xbf16, #tpu.memory_space<vmem>>, vector<128x128xbf16>
    %cst = arith.constant dense<0.000000e+00> : vector<208x128xf32>
    %6 = tpu.matmul %4, %5, %cst {dimension_numbers = #tpu.dot_dimension_numbers<[1], [0], [0], [1], [0, 0, 1, 1], [], []>} : vector<208x128xbf16>, vector<128x128xbf16>, vector<208x128xf32> -> vector<208x128xf32>
    %7 = arith.addf %3, %6 : vector<208x128xf32>
    %c0_6 = arith.constant 0 : index
    %c0_7 = arith.constant 0 : index
    %8 = vector.load %arg8[%c0_6, %c0_7] : memref<208x128xf32, #tpu.memory_space<vmem>>, vector<208x128xf32>
    tpu.vector_store %arg8[%c0_6, %c0_7], %7 {strides = array<i32>} : memref<208x128xf32, #tpu.memory_space<vmem>>, vector<208x128xf32>,
    %c2_i32 = arith.constant 2 : i32
    %9 = arith.cmpi eq, %arg2, %c2_i32 : i32
    %10 = arith.extui %9 : i1 to i32
    %c0_i32_8 = arith.constant 0 : i32
    %11 = arith.cmpi ne, %10, %c0_i32_8 : i32
    scf.if %11 {
      %c0_9 = arith.constant 0 : index
      %c0_10 = arith.constant 0 : index
      %12 = vector.load %arg8[%c0_9, %c0_10] : memref<208x128xf32, #tpu.memory_space<vmem>>, vector<208x128xf32>
      %c0_11 = arith.constant 0 : index
      %c0_12 = arith.constant 0 : index
      %13 = vector.load %arg5[%c0_11, %c0_12] : memref<1x128xf32, #tpu.memory_space<vmem>>, vector<1x128xf32>
      %14 = vector.broadcast %13 : vector<1x128xf32> to vector<208x128xf32>
      %15 = arith.addf %12, %14 : vector<208x128xf32>
      %c0_13 = arith.constant 0 : index
      %c0_14 = arith.constant 0 : index
      %16 = vector.load %arg6[%c0_13, %c0_14] : memref<208x128xf32, #tpu.memory_space<vmem>>, vector<208x128xf32>
      %17 = arith.addf %15, %16 : vector<208x128xf32>
      %cst_15 = arith.constant 0.000000e+00 : f32
      %18 = vector.broadcast %cst_15 : f32 to vector<208x128xf32>
      %19 = arith.maximumf %17, %18 : vector<208x128xf32>
      %c0_16 = arith.constant 0 : index
      %c0_17 = arith.constant 0 : index
      %20 = vector.load %arg7[%c0_16, %c0_17] : memref<208x128xf32, #tpu.memory_space<vmem>>, vector<208x128xf32>
      tpu.vector_store %arg7[%c0_16, %c0_17], %19 {strides = array<i32>} : memref<208x128xf32, #tpu.memory_space<vmem>>, vector<208x128xf32>,
    } else {
    }
    return
  }
  func.func @transform_0(%arg0: i32, %arg1: i32, %arg2: i32) -> (i32, i32) {
    %c0_i32 = arith.constant 0 : i32
    return %arg0, %arg2 : i32, i32
  }
  func.func @transform_1(%arg0: i32, %arg1: i32, %arg2: i32) -> (i32, i32) {
    %c0_i32 = arith.constant 0 : i32
    return %arg2, %arg1 : i32, i32
  }
  func.func @transform_2(%arg0: i32, %arg1: i32, %arg2: i32) -> (i32, i32) {
    %c0_i32 = arith.constant 0 : i32
    %c0_i32_0 = arith.constant 0 : i32
    return %c0_i32, %arg1 : i32, i32
  }
  func.func @transform_3(%arg0: i32, %arg1: i32, %arg2: i32) -> (i32, i32) {
    %c0_i32 = arith.constant 0 : i32
    return %arg0, %arg1 : i32, i32
  }
  func.func @transform_4(%arg0: i32, %arg1: i32, %arg2: i32) -> (i32, i32) {
    %c0_i32 = arith.constant 0 : i32
    return %arg0, %arg1 : i32, i32
  }
}

</mosaic_0001>

<llo_original>
// kernel: tpu_custom_call.1
$region0: #{tpu_custom_call.1}
  #allocation0 [shape = 'u32[]', space=smem, size = 0x4, offset = 0x4, fixed_abs, tag = 'smem constant byte address 0x4 - core index']
  #allocation1 [shape = 'u32[144,128]{1,0:T(1,128)}', space=vmem, size = 0x12000, scoped, tag = 'internal scratch']
  #allocation2 [shape = 'f32[208,128]{1,0:T(8,128)}', space=vmem, size = 0x1a000, scoped, tag = 'scratch operand']
  %s0 = inlined_call_operand.hbm [shape: bf16[208,384], index: 0, kind: input, shape index: {}]
  %s1 = inlined_call_operand.hbm [shape: bf16[384,128], index: 1, kind: input, shape index: {}]
  %s2 = inlined_call_operand.vmem [shape: f32[1,128], index: 2, kind: input, shape index: {}]
  %s3 = inlined_call_operand.hbm [shape: f32[208,128], index: 3, kind: input, shape index: {}]
  %s4 = inlined_call_operand.hbm [shape: f32[208,128], index: 4, kind: output, shape index: {}]
  %s5 = sld [smem:[#allocation0]]
  $region69: #{tpu_custom_call.1} parent=0
    _
  %s7 = ssub.s32 1, %s5
  %s8 = scalar_select 0, %s7, %s5
  $region1: #{tpu_custom_call.1} parent=0
    #allocation3 [shape = 'u8[106496]{0}', space=vmem, size = 0x1a000, scoped, tag = 'input window, operand 0']
    #allocation4 [shape = 's32[2]{0}', space=sflag, size = 0x8, scoped, tag = 'scoped memory for tpu_custom_call.1']
    #allocation5 [shape = 's32[2]{0}', space=sflag, size = 0x8, scoped, tag = 'scoped memory for tpu_custom_call.1']
    #allocation6 [shape = 'u8[65536]{0}', space=vmem, size = 0x10000, scoped, tag = 'input window, operand 1']
    #allocation7 [shape = 's32[2]{0}', space=sflag, size = 0x8, scoped, tag = 'scoped memory for tpu_custom_call.1']
    #allocation8 [shape = 'u8[106496]{0}', space=vmem, size = 0x1a000, scoped, tag = 'input window, operand 3, single buffered']
    #allocation9 [shape = 'u8[106496]{0}', space=vmem, size = 0x1a000, scoped, tag = 'output window, operand 0, single buffered']
    %9 = vsyncpa [#allocation4], 0
    %s10 = scalar_lea.sflag [#allocation4], 1
    %11 = vsyncpa %s10, 0
    %12 = vsyncpa [#allocation7], 0
    %s13 = scalar_lea.sflag [#allocation7], 1
    %14 = vsyncpa %s13, 0
    %15 = vsyncpa [#allocation5], 0
    loop: start=0, step=1, limit=5
    $region2: #{tpu_custom_call.1} parent=1 // loop_pre_header
      _
    $region3: #{tpu_custom_call.1} parent=1 // loop_header
      %s17 = sphi 0, %s21
      %p18 = scmp.ge.s32.totalorder %s17, 5
      %s24 = sphi 0, %s43
      %s25 = sphi 0, %s39
      %s26 = sphi 0, %s35
      %s27 = sphi 0, %s24
      %s28 = sphi 0, %s25
      %s29 = sphi 0, %s26
      %s30 = sphi 0, %s27
      %s31 = sphi 0, %s28
      %s32 = sphi 0, %s29
      %s48 = sphi 0, %s50
      %s51 = sphi 0, %s48
      %s52 = sphi 0, %s51
      %s68 = sphi 0, %s52
      %s76 = sphi 0, %s78
      %s79 = sphi 0, %s76
      %s80 = sphi 0, %s79
      %s96 = sphi 0, %s80
      %s102 = sphi 0, %s104
      %s105 = sphi 0, %s102
      %s106 = sphi 0, %s105
      %s122 = sphi 0, %s106
      %s130 = sphi 0, %s132
      %s133 = sphi 0, %s130
      %s134 = sphi 0, %s133
      %s150 = sphi 0, %s134
      %s158 = sphi 0, %s160
      %s161 = sphi 0, %s158
      %s162 = sphi 0, %s161
      %s178 = sphi 0, %s162
    $region4: #{tpu_custom_call.1} parent=1 // loop_header_branch
      %20 = sbr.rel (%p18) target = $region8
    $region5: #{tpu_custom_call.1} parent=1 // loop_body
      %s22 = ssub.s32 %s17, 1
      %s23 = ssub.s32 %s17, 2
      %s33 = sadd.s32 1, %s26
      %p34 = scmp.ge.s32.totalorder %s33, 3
      %s35 = scalar_select %p34, 0, %s33
      %s36 = sadd.s32 1, %s25
      %s37 = scalar_select %p34, %s36, %s25
      %p38 = scmp.ge.s32.totalorder %s37, 1
      %s39 = scalar_select %p38, 0, %s37
      %s40 = sadd.s32 1, %s24
      %s41 = scalar_select %p38, %s40, %s24
      %p42 = scmp.ge.s32.totalorder %s41, 1
      %s43 = scalar_select %p42, 0, %s41
      %s44 = ssub.s32 %s24, %s43
      %s45 = ssub.s32 %s26, %s35
      %s46 = sor.u32 %s44, %s45
      %p47 = scmp.eq.s32.totalorder %s46, 0
      %s49 = sadd.s32 %s48, 1
      %s50 = scalar_select %p47, %s48, %s49
      %p53 = pneg %p47
      %p54 = scmp.eq.s32.totalorder %s17, 2
      %p55 = por %p53, %p54
      %p56 = scmp.ne.s32.totalorder %s48, %s51
      %p57 = scmp.eq.s32.totalorder %s17, 0
      %p58 = por %p56, %p57
      %p59 = scmp.ne.s32.totalorder %s48, %s51
      %p60 = scmp.eq.s32.totalorder %s22, 2
      %p61 = por %p59, %p60
      %p62 = scmp.ne.s32.totalorder %s51, %s52
      %p63 = scmp.eq.s32.totalorder %s22, 0
      %p64 = por %p62, %p63
      %p65 = scmp.ne.s32.totalorder %s51, %s52
      %p66 = scmp.eq.s32.totalorder %s23, 2
      %p67 = por %p65, %p66
      %p69 = scmp.ne.s32.totalorder %s52, %s68
      %p70 = scmp.eq.s32.totalorder %s23, 0
      %p71 = por %p69, %p70
      %s72 = ssub.s32 %s26, %s35
      %s73 = ssub.s32 %s25, %s39
      %s74 = sor.u32 %s72, %s73
      %p75 = scmp.eq.s32.totalorder %s74, 0
      %s77 = sadd.s32 %s76, 1
      %s78 = scalar_select %p75, %s76, %s77
      %p81 = pneg %p75
      %p82 = scmp.eq.s32.totalorder %s17, 2
      %p83 = por %p81, %p82
      %p84 = scmp.ne.s32.totalorder %s76, %s79
      %p85 = scmp.eq.s32.totalorder %s17, 0
      %p86 = por %p84, %p85
      %p87 = scmp.ne.s32.totalorder %s76, %s79
      %p88 = scmp.eq.s32.totalorder %s22, 2
      %p89 = por %p87, %p88
      %p90 = scmp.ne.s32.totalorder %s79, %s80
      %p91 = scmp.eq.s32.totalorder %s22, 0
      %p92 = por %p90, %p91
      %p93 = scmp.ne.s32.totalorder %s79, %s80
      %p94 = scmp.eq.s32.totalorder %s23, 2
      %p95 = por %p93, %p94
      %p97 = scmp.ne.s32.totalorder %s80, %s96
      %p98 = scmp.eq.s32.totalorder %s23, 0
      %p99 = por %p97, %p98
      %s100 = ssub.s32 %s25, %s39
      %p101 = scmp.eq.s32.totalorder %s100, 0
      %s103 = sadd.s32 %s102, 1
      %s104 = scalar_select %p101, %s102, %s103
      %p107 = pneg %p101
      %p108 = scmp.eq.s32.totalorder %s17, 2
      %p109 = por %p107, %p108
      %p110 = scmp.ne.s32.totalorder %s102, %s105
      %p111 = scmp.eq.s32.totalorder %s17, 0
      %p112 = por %p110, %p111
      %p113 = scmp.ne.s32.totalorder %s102, %s105
      %p114 = scmp.eq.s32.totalorder %s22, 2
      %p115 = por %p113, %p114
      %p116 = scmp.ne.s32.totalorder %s105, %s106
      %p117 = scmp.eq.s32.totalorder %s22, 0
      %p118 = por %p116, %p117
      %p119 = scmp.ne.s32.totalorder %s105, %s106
      %p120 = scmp.eq.s32.totalorder %s23, 2
      %p121 = por %p119, %p120
      %p123 = scmp.ne.s32.totalorder %s106, %s122
      %p124 = scmp.eq.s32.totalorder %s23, 0
      %p125 = por %p123, %p124
      %s126 = ssub.s32 %s24, %s43
      %s127 = ssub.s32 %s25, %s39
      %s128 = sor.u32 %s126, %s127
      %p129 = scmp.eq.s32.totalorder %s128, 0
      %s131 = sadd.s32 %s130, 1
      %s132 = scalar_select %p129, %s130, %s131
      %p135 = pneg %p129
      %p136 = scmp.eq.s32.totalorder %s17, 2
      %p137 = por %p135, %p136
      %p138 = scmp.ne.s32.totalorder %s130, %s133
      %p139 = scmp.eq.s32.totalorder %s17, 0
      %p140 = por %p138, %p139
      %p141 = scmp.ne.s32.totalorder %s130, %s133
      %p142 = scmp.eq.s32.totalorder %s22, 2
      %p143 = por %p141, %p142
      %p144 = scmp.ne.s32.totalorder %s133, %s134
      %p145 = scmp.eq.s32.totalorder %s22, 0
      %p146 = por %p144, %p145
      %p147 = scmp.ne.s32.totalorder %s133, %s134
      %p148 = scmp.eq.s32.totalorder %s23, 2
      %p149 = por %p147, %p148
      %p151 = scmp.ne.s32.totalorder %s134, %s150
      %p152 = scmp.eq.s32.totalorder %s23, 0
      %p153 = por %p151, %p152
      %s154 = ssub.s32 %s24, %s43
      %s155 = ssub.s32 %s25, %s39
      %s156 = sor.u32 %s154, %s155
      %p157 = scmp.eq.s32.totalorder %s156, 0
      %s159 = sadd.s32 %s158, 1
      %s160 = scalar_select %p157, %s158, %s159
      %p163 = pneg %p157
      %p164 = scmp.eq.s32.totalorder %s17, 2
      %p165 = por %p163, %p164
      %p166 = scmp.ne.s32.totalorder %s158, %s161
      %p167 = scmp.eq.s32.totalorder %s17, 0
      %p168 = por %p166, %p167
      %p169 = scmp.ne.s32.totalorder %s158, %s161
      %p170 = scmp.eq.s32.totalorder %s22, 2
      %p171 = por %p169, %p170
      %p172 = scmp.ne.s32.totalorder %s161, %s162
      %p173 = scmp.eq.s32.totalorder %s22, 0
      %p174 = por %p172, %p173
      %p175 = scmp.ne.s32.totalorder %s161, %s162
      %p176 = scmp.eq.s32.totalorder %s23, 2
      %p177 = por %p175, %p176
      %p179 = scmp.ne.s32.totalorder %s162, %s178
      %p180 = scmp.eq.s32.totalorder %s23, 0
      %p181 = por %p179, %p180
      %p182 = scmp.le.s32.totalorder 1, %s17
      %p183 = scmp.lt.s32.totalorder %s17, 4
      %p184 = pnand %p182, %p183
      %p185 = pneg %p184
      // Predicated region
      $region9: #{tpu_custom_call.1} parent=5 // pred_check
        _
      $region10: #{tpu_custom_call.1} parent=5 // pred_check_branch
        %187 = sbr.rel (%p184) target = $region12
      $region11: #{tpu_custom_call.1} parent=5 // pred_region
        %s188 = ssub.s32 %s17, 1
        // Predicated region
        $region13: #{tpu_custom_call.1} parent=11 // pred_check
          %p189 = pneg %p118
        $region14: #{tpu_custom_call.1} parent=11 // pred_check_branch
          %191 = sbr.rel (%p189) target = $region16
        $region15: #{tpu_custom_call.1} parent=11 // pred_region
          %p192 = scmp.lt.s32.totalorder %s28, 0
          %s193 = scalar_select %p192, %s28, 0
          %s194 = scalar_lea.vmem %s2, %s193
        $region16: #{tpu_custom_call.1} parent=11 // pred_fallthru
          _
        // Predicated region
        $region17: #{tpu_custom_call.1} parent=11 // pred_check
          %p195 = pneg %p146
        $region18: #{tpu_custom_call.1} parent=11 // pred_check_branch
          %197 = sbr.rel (%p195) target = $region20
        $region19: #{tpu_custom_call.1} parent=11 // pred_region
          %s198 = smul.u32 26, %s27
          %s200 = ssub.s32 3328, 3328
          %201 = vsyncadd [#allocation7], %s200
          %s202 = sadd.s32 %s28, %s198
          %s203 = smul.addr %s202, 128
          %s204 = scalar_lea.hbm %s3, %s203
          %s205 = sshll.u32 [#allocation8], 4
          %s206 = int_to_ptr.vmem [resolvable:$true] %s205
          %211 = dma.hbm_to_vmem [thread:$0]  %s204, 3328, %s206, [#allocation7], 128, 128, 8
        $region20: #{tpu_custom_call.1} parent=11 // pred_fallthru
          _
      $region12: #{tpu_custom_call.1} parent=5 // pred_fallthru
        _
      %p212 = scmp.lt.s32.totalorder %s17, 3
      // Predicated region
      $region21: #{tpu_custom_call.1} parent=5 // pred_check
        %p213 = pneg %p212
      $region22: #{tpu_custom_call.1} parent=5 // pred_check_branch
        %215 = sbr.rel (%p213) target = $region24
      $region23: #{tpu_custom_call.1} parent=5 // pred_region
        // Predicated region
        $region25: #{tpu_custom_call.1} parent=23 // pred_check
          %p216 = pneg %p58
        $region26: #{tpu_custom_call.1} parent=23 // pred_check_branch
          %218 = sbr.rel (%p216) target = $region28
        $region27: #{tpu_custom_call.1} parent=23 // pred_region
          %s219 = sand.u32 %s48, 1
          %s220 = scalar_lea.sflag [#allocation4], %s219
          %s221 = sand.u32 %s48, 1
          %s222 = smul.addr %s221, 104
          %s223 = scalar_lea.vmem [#allocation3], %s222
          %s224 = smul.u32 26, %s24
          %s226 = ssub.s32 1664, 1664
          %227 = vsyncadd %s220, %s226
          %s228 = smul.addr %s224, 3
          %s229 = sadd.s32 %s26, %s228
          %s230 = smul.addr %s229, 64
          %s231 = scalar_lea.hbm %s0, %s230
          %s232 = sshll.u32 %s223, 4
          %s233 = int_to_ptr.vmem [resolvable:$true] %s232
          %238 = dma.hbm_to_vmem [thread:$0]  %s231, 1664, %s233, %s220, 192, 64, 4
        $region28: #{tpu_custom_call.1} parent=23 // pred_fallthru
          _
        // Predicated region
        $region29: #{tpu_custom_call.1} parent=23 // pred_check
          %p239 = pneg %p86
        $region30: #{tpu_custom_call.1} parent=23 // pred_check_branch
          %241 = sbr.rel (%p239) target = $region32
        $region31: #{tpu_custom_call.1} parent=23 // pred_region
          %s242 = sand.u32 %s17, 1
          %s243 = scalar_lea.sflag [#allocation7], %s242
          %s244 = sand.u32 %s76, 1
          %s245 = smul.addr %s244, 64
          %s246 = scalar_lea.vmem [#allocation6], %s245
          %s247 = smul.u32 16, %s26
          %s249 = ssub.s32 1024, 1024
          %250 = vsyncadd %s243, %s249
          %s251 = sadd.s32 %s25, %s247
          %s252 = smul.addr %s251, 64
          %s253 = scalar_lea.hbm %s1, %s252
          %s254 = sshll.u32 %s246, 4
          %s255 = int_to_ptr.vmem [resolvable:$true] %s254
          %260 = dma.hbm_to_vmem [thread:$0]  %s253, 1024, %s255, %s243, 64, 64, 4
        $region32: #{tpu_custom_call.1} parent=23 // pred_fallthru
          _
      $region24: #{tpu_custom_call.1} parent=5 // pred_fallthru
        _
      %p261 = scmp.le.s32.totalorder 1, %s17
      %p262 = scmp.lt.s32.totalorder %s17, 4
      %p263 = pnand %p261, %p262
      %p264 = pneg %p263
      // Predicated region
      $region33: #{tpu_custom_call.1} parent=5 // pred_check
        _
      $region34: #{tpu_custom_call.1} parent=5 // pred_check_branch
        %266 = sbr.rel (%p263) target = $region36
      $region35: #{tpu_custom_call.1} parent=5 // pred_region
        %s267 = ssub.s32 %s17, 1
        %s268 = sand.u32 %s51, 1
        %s269 = scalar_lea.sflag [#allocation4], %s268
        %s270 = sand.u32 %s51, 1
        %s271 = smul.addr %s270, 104
        %s272 = scalar_lea.vmem [#allocation3], %s271
        // Predicated region
        $region37: #{tpu_custom_call.1} parent=35 // pred_check
          %p273 = pneg %p64
        $region38: #{tpu_custom_call.1} parent=35 // pred_check_branch
          %275 = sbr.rel (%p273) target = $region40
        $region39: #{tpu_custom_call.1} parent=35 // pred_region
          %276 = dma.done %s269, 1664
        $region40: #{tpu_custom_call.1} parent=35 // pred_fallthru
          _
        %s277 = sand.u32 %s22, 1
        %s278 = scalar_lea.sflag [#allocation7], %s277
        %s279 = sand.u32 %s79, 1
        %s280 = smul.addr %s279, 64
        %s281 = scalar_lea.vmem [#allocation6], %s280
        // Predicated region
        $region41: #{tpu_custom_call.1} parent=35 // pred_check
          %p282 = pneg %p92
        $region42: #{tpu_custom_call.1} parent=35 // pred_check_branch
          %284 = sbr.rel (%p282) target = $region44
        $region43: #{tpu_custom_call.1} parent=35 // pred_region
          %285 = dma.done %s278, 1024
        $region44: #{tpu_custom_call.1} parent=35 // pred_fallthru
          _
        // Predicated region
        $region45: #{tpu_custom_call.1} parent=35 // pred_check
          %p286 = pneg %p146
        $region46: #{tpu_custom_call.1} parent=35 // pred_check_branch
          %288 = sbr.rel (%p286) target = $region48
        $region47: #{tpu_custom_call.1} parent=35 // pred_region
          %289 = dma.done [#allocation7], 3328
        $region48: #{tpu_custom_call.1} parent=35 // pred_fallthru
          _
        %s290 = sand.u32 %s51, 1
        %s291 = scalar_lea.sflag [#allocation4], %s290
        %s292 = sand.u32 %s51, 1
        %s293 = smul.addr %s292, 104
        %s294 = scalar_lea.vmem [#allocation3], %s293
        %p295 = pneg %p64
        %p296 = pneg %p61
        %s297 = sand.u32 %s22, 1
        %s298 = scalar_lea.sflag [#allocation7], %s297
        %s299 = sand.u32 %s79, 1
        %s300 = smul.addr %s299, 64
        %s301 = scalar_lea.vmem [#allocation6], %s300
        %p302 = pneg %p92
        %p303 = pneg %p89
        %p304 = scmp.lt.s32.totalorder %s28, 0
        %s305 = scalar_select %p304, %s28, 0
        %s306 = scalar_lea.vmem %s2, %s305
        %p307 = pneg %p118
        %p308 = pneg %p115
        %p309 = pneg %p146
        %p310 = pneg %p143
        %p311 = pneg %p174
        %p312 = pneg %p171
        %s313 = smul.u32 26, %s27
        %s314 = smul.u32 16, %s29
        %p315 = scmp.lt.s32.totalorder %s28, 0
        %s316 = scalar_select %p315, %s28, 0
        %s317 = scalar_lea.vmem %s2, %s316
        %s318 = smul.u32 26, %s27
        %s319 = smul.u32 26, %s27
        %p321 = scmp.eq.s32.totalorder %s29, 0
        // Predicated region
        $region49: #{tpu_custom_call.1} parent=35 // pred_check
          %p322 = pneg %p321
        $region50: #{tpu_custom_call.1} parent=35 // pred_check_branch
          %324 = sbr.rel (%p322) target = $region52
        $region51: #{tpu_custom_call.1} parent=35 // pred_region
          %325 = vst [vmem:[#allocation2] sm:$0xff] 0.0
          %326 = vst [vmem:[#allocation2 + $0x8] sm:$0xff] 0.0
          %327 = vst [vmem:[#allocation2 + $0x10] sm:$0xff] 0.0
          %328 = vst [vmem:[#allocation2 + $0x18] sm:$0xff] 0.0
          %329 = vst [vmem:[#allocation2 + $0x20] sm:$0xff] 0.0
          %330 = vst [vmem:[#allocation2 + $0x28] sm:$0xff] 0.0
          %331 = vst [vmem:[#allocation2 + $0x30] sm:$0xff] 0.0
          %332 = vst [vmem:[#allocation2 + $0x38] sm:$0xff] 0.0
          %333 = vst [vmem:[#allocation2 + $0x40] sm:$0xff] 0.0
          %334 = vst [vmem:[#allocation2 + $0x48] sm:$0xff] 0.0
          %335 = vst [vmem:[#allocation2 + $0x50] sm:$0xff] 0.0
          %336 = vst [vmem:[#allocation2 + $0x58] sm:$0xff] 0.0
          %337 = vst [vmem:[#allocation2 + $0x60] sm:$0xff] 0.0
          %338 = vst [vmem:[#allocation2 + $0x68] sm:$0xff] 0.0
          %339 = vst [vmem:[#allocation2 + $0x70] sm:$0xff] 0.0
          %340 = vst [vmem:[#allocation2 + $0x78] sm:$0xff] 0.0
          %341 = vst [vmem:[#allocation2 + $0x80] sm:$0xff] 0.0
          %342 = vst [vmem:[#allocation2 + $0x88] sm:$0xff] 0.0
          %343 = vst [vmem:[#allocation2 + $0x90] sm:$0xff] 0.0
          %344 = vst [vmem:[#allocation2 + $0x98] sm:$0xff] 0.0
          %345 = vst [vmem:[#allocation2 + $0xa0] sm:$0xff] 0.0
          %346 = vst [vmem:[#allocation2 + $0xa8] sm:$0xff] 0.0
          %347 = vst [vmem:[#allocation2 + $0xb0] sm:$0xff] 0.0
          %348 = vst [vmem:[#allocation2 + $0xb8] sm:$0xff] 0.0
          %349 = vst [vmem:[#allocation2 + $0xc0] sm:$0xff] 0.0
          %350 = vst [vmem:[#allocation2 + $0xc8] sm:$0xff] 0.0
        $region52: #{tpu_custom_call.1} parent=35 // pred_fallthru
          _
        %v351 = vld [vmem:[#allocation2] sm:$0xff]
        %v352 = vld [vmem:[#allocation2 + $0x8] sm:$0xff]
        %v353 = vld [vmem:[#allocation2 + $0x10] sm:$0xff]
        %v354 = vld [vmem:[#allocation2 + $0x18] sm:$0xff]
        %v355 = vld [vmem:[#allocation2 + $0x20] sm:$0xff]
        %v356 = vld [vmem:[#allocation2 + $0x28] sm:$0xff]
        %v357 = vld [vmem:[#allocation2 + $0x30] sm:$0xff]
        %v358 = vld [vmem:[#allocation2 + $0x38] sm:$0xff]
        %v359 = vld [vmem:[#allocation2 + $0x40] sm:$0xff]
        %v360 = vld [vmem:[#allocation2 + $0x48] sm:$0xff]
        %v361 = vld [vmem:[#allocation2 + $0x50] sm:$0xff]
        %v362 = vld [vmem:[#allocation2 + $0x58] sm:$0xff]
        %v363 = vld [vmem:[#allocation2 + $0x60] sm:$0xff]
        %v364 = vld [vmem:[#allocation2 + $0x68] sm:$0xff]
        %v365 = vld [vmem:[#allocation2 + $0x70] sm:$0xff]
        %v366 = vld [vmem:[#allocation2 + $0x78] sm:$0xff]
        %v367 = vld [vmem:[#allocation2 + $0x80] sm:$0xff]
        %v368 = vld [vmem:[#allocation2 + $0x88] sm:$0xff]
        %v369 = vld [vmem:[#allocation2 + $0x90] sm:$0xff]
        %v370 = vld [vmem:[#allocation2 + $0x98] sm:$0xff]
        %v371 = vld [vmem:[#allocation2 + $0xa0] sm:$0xff]
        %v372 = vld [vmem:[#allocation2 + $0xa8] sm:$0xff]
        %v373 = vld [vmem:[#allocation2 + $0xb0] sm:$0xff]
        %v374 = vld [vmem:[#allocation2 + $0xb8] sm:$0xff]
        %v375 = vld [vmem:[#allocation2 + $0xc0] sm:$0xff]
        %v376 = vld [vmem:[#allocation2 + $0xc8] sm:$0xff]
        %v377 = vld [vmem:[%s272] sm:$0xf]
        %v378 = vld [vmem:[%s272 + $0x4] sm:$0xf]
        %v379 = vld [vmem:[%s272 + $0x8] sm:$0xf]
        %v380 = vld [vmem:[%s272 + $0xc] sm:$0xf]
        %v381 = vld [vmem:[%s272 + $0x10] sm:$0xf]
        %v382 = vld [vmem:[%s272 + $0x14] sm:$0xf]
        %v383 = vld [vmem:[%s272 + $0x18] sm:$0xf]
        %v384 = vld [vmem:[%s272 + $0x1c] sm:$0xf]
        %v385 = vld [vmem:[%s272 + $0x20] sm:$0xf]
        %v386 = vld [vmem:[%s272 + $0x24] sm:$0xf]
        %v387 = vld [vmem:[%s272 + $0x28] sm:$0xf]
        %v388 = vld [vmem:[%s272 + $0x2c] sm:$0xf]
        %v389 = vld [vmem:[%s272 + $0x30] sm:$0xf]
        %v390 = vld [vmem:[%s272 + $0x34] sm:$0xf]
        %v391 = vld [vmem:[%s272 + $0x38] sm:$0xf]
        %v392 = vld [vmem:[%s272 + $0x3c] sm:$0xf]
        %v393 = vld [vmem:[%s272 + $0x40] sm:$0xf]
        %v394 = vld [vmem:[%s272 + $0x44] sm:$0xf]
        %v395 = vld [vmem:[%s272 + $0x48] sm:$0xf]
        %v396 = vld [vmem:[%s272 + $0x4c] sm:$0xf]
        %v397 = vld [vmem:[%s272 + $0x50] sm:$0xf]
        %v398 = vld [vmem:[%s272 + $0x54] sm:$0xf]
        %v399 = vld [vmem:[%s272 + $0x58] sm:$0xf]
        %v400 = vld [vmem:[%s272 + $0x5c] sm:$0xf]
        %v401 = vld [vmem:[%s272 + $0x60] sm:$0xf]
        %v402 = vld [vmem:[%s272 + $0x64] sm:$0xf]
        %v403 = vld [vmem:[%s281] sm:$0xf]
        %v404 = vld [vmem:[%s281 + $0x4] sm:$0xf]
        %v405 = vld [vmem:[%s281 + $0x8] sm:$0xf]
        %v406 = vld [vmem:[%s281 + $0xc] sm:$0xf]
        %v407 = vld [vmem:[%s281 + $0x10] sm:$0xf]
        %v408 = vld [vmem:[%s281 + $0x14] sm:$0xf]
        %v409 = vld [vmem:[%s281 + $0x18] sm:$0xf]
        %v410 = vld [vmem:[%s281 + $0x1c] sm:$0xf]
        %v411 = vld [vmem:[%s281 + $0x20] sm:$0xf]
        %v412 = vld [vmem:[%s281 + $0x24] sm:$0xf]
        %v413 = vld [vmem:[%s281 + $0x28] sm:$0xf]
        %v414 = vld [vmem:[%s281 + $0x2c] sm:$0xf]
        %v415 = vld [vmem:[%s281 + $0x30] sm:$0xf]
        %v416 = vld [vmem:[%s281 + $0x34] sm:$0xf]
        %v417 = vld [vmem:[%s281 + $0x38] sm:$0xf]
        %v418 = vld [vmem:[%s281 + $0x3c] sm:$0xf]
        %v445 = vunpack.c.l.b16 %v377
        %v446 = vunpack.c.l.b16 %v378
        %v447 = vunpack.c.l.b16 %v379
        %v448 = vunpack.c.l.b16 %v380
        %v449 = vunpack.c.l.b16 %v381
        %v450 = vunpack.c.l.b16 %v382
        %v451 = vunpack.c.l.b16 %v383
        %v452 = vunpack.c.l.b16 %v384
        %v453 = vunpack.c.l.b16 %v385
        %v454 = vunpack.c.l.b16 %v386
        %v455 = vunpack.c.l.b16 %v387
        %v456 = vunpack.c.l.b16 %v388
        %v457 = vunpack.c.l.b16 %v389
        %v458 = vunpack.c.l.b16 %v390
        %v459 = vunpack.c.l.b16 %v391
        %v460 = vunpack.c.l.b16 %v392
        %v461 = vunpack.c.l.b16 %v393
        %v462 = vunpack.c.l.b16 %v394
        %v463 = vunpack.c.l.b16 %v395
        %v464 = vunpack.c.l.b16 %v396
        %v465 = vunpack.c.l.b16 %v397
        %v466 = vunpack.c.l.b16 %v398
        %v467 = vunpack.c.l.b16 %v399
        %v468 = vunpack.c.l.b16 %v400
        %v469 = vunpack.c.l.b16 %v401
        %v470 = vunpack.c.l.b16 %v402
        %v471 = vpack.c.b16 %v446, %v445
        %v472 = vpack.c.b16 %v448, %v447
        %v473 = vpack.c.b16 %v450, %v449
        %v474 = vpack.c.b16 %v452, %v451
        %v475 = vpack.c.b16 %v454, %v453
        %v476 = vpack.c.b16 %v456, %v455
        %v477 = vpack.c.b16 %v458, %v457
        %v478 = vpack.c.b16 %v460, %v459
        %v479 = vpack.c.b16 %v462, %v461
        %v480 = vpack.c.b16 %v464, %v463
        %v481 = vpack.c.b16 %v466, %v465
        %v482 = vpack.c.b16 %v468, %v467
        %v483 = vpack.c.b16 %v470, %v469
        %v513 = vunpack.c.l.b16 %v403
        %v514 = vunpack.c.l.b16 %v404
        %v515 = vunpack.c.l.b16 %v405
        %v516 = vunpack.c.l.b16 %v406
        %v517 = vunpack.c.l.b16 %v407
        %v518 = vunpack.c.l.b16 %v408
        %v519 = vunpack.c.l.b16 %v409
        %v520 = vunpack.c.l.b16 %v410
        %v521 = vunpack.c.l.b16 %v411
        %v522 = vunpack.c.l.b16 %v412
        %v523 = vunpack.c.l.b16 %v413
        %v524 = vunpack.c.l.b16 %v414
        %v525 = vunpack.c.l.b16 %v415
        %v526 = vunpack.c.l.b16 %v416
        %v527 = vunpack.c.l.b16 %v417
        %v528 = vunpack.c.l.b16 %v418
        %v529 = vpack.c.b16 %v514, %v513
        %v530 = vpack.c.b16 %v516, %v515
        %v531 = vpack.c.b16 %v518, %v517
        %v532 = vpack.c.b16 %v520, %v519
        %v533 = vpack.c.b16 %v522, %v521
        %v534 = vpack.c.b16 %v524, %v523
        %v535 = vpack.c.b16 %v526, %v525
        %v536 = vpack.c.b16 %v528, %v527
        %545 = vmatprep.subr.bf16.mxu0 0
        %546 = vmatpush1.bf16.msra.mxu0 %v529
        %547 = vmatprep.subr.bf16.mxu0 0
        %548 = vmatpush1.bf16.msra.mxu0 %v530
        %549 = vmatprep.subr.bf16.mxu0 0
        %550 = vmatpush1.bf16.msra.mxu0 %v531
        %551 = vmatprep.subr.bf16.mxu0 0
        %552 = vmatpush1.bf16.msra.mxu0 %v532
        %553 = vmatprep.subr.bf16.mxu0 0
        %554 = vmatpush1.bf16.msra.mxu0 %v533
        %555 = vmatprep.subr.bf16.mxu0 0
        %556 = vmatpush1.bf16.msra.mxu0 %v534
        %557 = vmatprep.subr.bf16.mxu0 0
        %558 = vmatpush1.bf16.msra.mxu0 %v535
        %559 = vmatprep.subr.bf16.mxu0 0
        %560 = vmatpush1.bf16.msra.mxu0 %v536
        %561 = vmatprep.subr.bf16.mxu0 0
        %562 = vmatpush1.bf16.msra.mxu0 0
        %563 = vmatprep.subr.bf16.mxu0 0
        %564 = vmatpush1.bf16.msra.mxu0 0
        %565 = vmatprep.subr.bf16.mxu0 0
        %566 = vmatpush1.bf16.msra.mxu0 0
        %567 = vmatprep.subr.bf16.mxu0 0
        %568 = vmatpush1.bf16.msra.mxu0 0
        %569 = vmatprep.subr.bf16.mxu0 0
        %570 = vmatpush1.bf16.msra.mxu0 0
        %571 = vmatprep.subr.bf16.mxu0 0
        %572 = vmatpush1.bf16.msra.mxu0 0
        %573 = vmatprep.subr.bf16.mxu0 0
        %574 = vmatpush1.bf16.msra.mxu0 0
        %575 = vmatprep.subr.bf16.mxu0 0
        %576 = vmatpush1.bf16.msra.mxu0 0
        %577 = vmatprep.mubr.bf16.mxu0 0
        %578 = vmatmul.mubr.bf16.gmra.mrb[0].mxu0 %v471
        %v579 = vpop.f32.mrb[0].mxu0
        %v580 = vadd.f32 0.0, %v579
        %v581 = vpop.f32.mrb[0].mxu0
        %v582 = vpop.f32.mrb[0].mxu0
        %v583 = vadd.f32 0.0, %v582
        %v584 = vpop.f32.mrb[0].mxu0
        %585 = vmatprep.mubr.bf16.mxu0 0
        %586 = vmatmul.mubr.bf16.gmra.mrb[0].mxu0 %v472
        %v587 = vpop.f32.mrb[0].mxu0
        %v588 = vadd.f32 0.0, %v587
        %v589 = vpop.f32.mrb[0].mxu0
        %v590 = vpop.f32.mrb[0].mxu0
        %v591 = vadd.f32 0.0, %v590
        %v592 = vpop.f32.mrb[0].mxu0
        %593 = vmatprep.mubr.bf16.mxu0 0
        %594 = vmatmul.mubr.bf16.gmra.mrb[0].mxu0 %v473
        %v595 = vpop.f32.mrb[0].mxu0
        %v596 = vadd.f32 0.0, %v595
        %v597 = vpop.f32.mrb[0].mxu0
        %v598 = vpop.f32.mrb[0].mxu0
        %v599 = vadd.f32 0.0, %v598
        %v600 = vpop.f32.mrb[0].mxu0
        %601 = vmatprep.mubr.bf16.mxu0 0
        %602 = vmatmul.mubr.bf16.gmra.mrb[0].mxu0 %v474
        %v603 = vpop.f32.mrb[0].mxu0
        %v604 = vadd.f32 0.0, %v603
        %v605 = vpop.f32.mrb[0].mxu0
        %v606 = vpop.f32.mrb[0].mxu0
        %v607 = vadd.f32 0.0, %v606
        %v608 = vpop.f32.mrb[0].mxu0
        %609 = vmatprep.mubr.bf16.mxu0 0
        %610 = vmatmul.mubr.bf16.gmra.mrb[0].mxu0 %v475
        %v611 = vpop.f32.mrb[0].mxu0
        %v612 = vadd.f32 0.0, %v611
        %v613 = vpop.f32.mrb[0].mxu0
        %v614 = vpop.f32.mrb[0].mxu0
        %v615 = vadd.f32 0.0, %v614
        %v616 = vpop.f32.mrb[0].mxu0
        %617 = vmatprep.mubr.bf16.mxu0 0
        %618 = vmatmul.mubr.bf16.gmra.mrb[0].mxu0 %v476
        %v619 = vpop.f32.mrb[0].mxu0
        %v620 = vadd.f32 0.0, %v619
        %v621 = vpop.f32.mrb[0].mxu0
        %v622 = vpop.f32.mrb[0].mxu0
        %v623 = vadd.f32 0.0, %v622
        %v624 = vpop.f32.mrb[0].mxu0
        %625 = vmatprep.mubr.bf16.mxu0 0
        %626 = vmatmul.mubr.bf16.gmra.mrb[0].mxu0 %v477
        %v627 = vpop.f32.mrb[0].mxu0
        %v628 = vadd.f32 0.0, %v627
        %v629 = vpop.f32.mrb[0].mxu0
        %v630 = vpop.f32.mrb[0].mxu0
        %v631 = vadd.f32 0.0, %v630
        %v632 = vpop.f32.mrb[0].mxu0
        %633 = vmatprep.mubr.bf16.mxu0 0
        %634 = vmatmul.mubr.bf16.gmra.mrb[0].mxu0 %v478
        %v635 = vpop.f32.mrb[0].mxu0
        %v636 = vadd.f32 0.0, %v635
        %v637 = vpop.f32.mrb[0].mxu0
        %v638 = vpop.f32.mrb[0].mxu0
        %v639 = vadd.f32 0.0, %v638
        %v640 = vpop.f32.mrb[0].mxu0
        %641 = vmatprep.mubr.bf16.mxu0 0
        %642 = vmatmul.mubr.bf16.gmra.mrb[0].mxu0 %v479
        %v643 = vpop.f32.mrb[0].mxu0
        %v644 = vadd.f32 0.0, %v643
        %v645 = vpop.f32.mrb[0].mxu0
        %v646 = vpop.f32.mrb[0].mxu0
        %v647 = vadd.f32 0.0, %v646
        %v648 = vpop.f32.mrb[0].mxu0
        %649 = vmatprep.mubr.bf16.mxu0 0
        %650 = vmatmul.mubr.bf16.gmra.mrb[0].mxu0 %v480
        %v651 = vpop.f32.mrb[0].mxu0
        %v652 = vadd.f32 0.0, %v651
        %v653 = vpop.f32.mrb[0].mxu0
        %v654 = vpop.f32.mrb[0].mxu0
        %v655 = vadd.f32 0.0, %v654
        %v656 = vpop.f32.mrb[0].mxu0
        %657 = vmatprep.mubr.bf16.mxu0 0
        %658 = vmatmul.mubr.bf16.gmra.mrb[0].mxu0 %v481
        %v659 = vpop.f32.mrb[0].mxu0
        %v660 = vadd.f32 0.0, %v659
        %v661 = vpop.f32.mrb[0].mxu0
        %v662 = vpop.f32.mrb[0].mxu0
        %v663 = vadd.f32 0.0, %v662
        %v664 = vpop.f32.mrb[0].mxu0
        %665 = vmatprep.mubr.bf16.mxu0 0
        %666 = vmatmul.mubr.bf16.gmra.mrb[0].mxu0 %v482
        %v667 = vpop.f32.mrb[0].mxu0
        %v668 = vadd.f32 0.0, %v667
        %v669 = vpop.f32.mrb[0].mxu0
        %v670 = vpop.f32.mrb[0].mxu0
        %v671 = vadd.f32 0.0, %v670
        %v672 = vpop.f32.mrb[0].mxu0
        %673 = vmatprep.mubr.bf16.mxu0 0
        %674 = vmatmul.mubr.bf16.gmra.mrb[0].mxu0 %v483
        %v675 = vpop.f32.mrb[0].mxu0
        %v676 = vadd.f32 0.0, %v675
        %v677 = vpop.f32.mrb[0].mxu0
        %v678 = vpop.f32.mrb[0].mxu0
        %v679 = vadd.f32 0.0, %v678
        %v680 = vpop.f32.mrb[0].mxu0
        %681 = vdwg.mxu0
        %v682 = vadd.f32 %v351, %v580
        %v683 = vadd.f32 %v352, %v583
        %v684 = vadd.f32 %v353, %v588
        %v685 = vadd.f32 %v354, %v591
        %v686 = vadd.f32 %v355, %v596
        %v687 = vadd.f32 %v356, %v599
        %v688 = vadd.f32 %v357, %v604
        %v689 = vadd.f32 %v358, %v607
        %v690 = vadd.f32 %v359, %v612
        %v691 = vadd.f32 %v360, %v615
        %v692 = vadd.f32 %v361, %v620
        %v693 = vadd.f32 %v362, %v623
        %v694 = vadd.f32 %v363, %v628
        %v695 = vadd.f32 %v364, %v631
        %v696 = vadd.f32 %v365, %v636
        %v697 = vadd.f32 %v366, %v639
        %v698 = vadd.f32 %v367, %v644
        %v699 = vadd.f32 %v368, %v647
        %v700 = vadd.f32 %v369, %v652
        %v701 = vadd.f32 %v370, %v655
        %v702 = vadd.f32 %v371, %v660
        %v703 = vadd.f32 %v372, %v663
        %v704 = vadd.f32 %v373, %v668
        %v705 = vadd.f32 %v374, %v671
        %v706 = vadd.f32 %v375, %v676
        %v707 = vadd.f32 %v376, %v679
        %708 = vst [vmem:[#allocation2] sm:$0xff] %v682
        %709 = vst [vmem:[#allocation2 + $0x8] sm:$0xff] %v683
        %710 = vst [vmem:[#allocation2 + $0x10] sm:$0xff] %v684
        %711 = vst [vmem:[#allocation2 + $0x18] sm:$0xff] %v685
        %712 = vst [vmem:[#allocation2 + $0x20] sm:$0xff] %v686
        %713 = vst [vmem:[#allocation2 + $0x28] sm:$0xff] %v687
        %714 = vst [vmem:[#allocation2 + $0x30] sm:$0xff] %v688
        %715 = vst [vmem:[#allocation2 + $0x38] sm:$0xff] %v689
        %716 = vst [vmem:[#allocation2 + $0x40] sm:$0xff] %v690
        %717 = vst [vmem:[#allocation2 + $0x48] sm:$0xff] %v691
        %718 = vst [vmem:[#allocation2 + $0x50] sm:$0xff] %v692
        %719 = vst [vmem:[#allocation2 + $0x58] sm:$0xff] %v693
        %720 = vst [vmem:[#allocation2 + $0x60] sm:$0xff] %v694
        %721 = vst [vmem:[#allocation2 + $0x68] sm:$0xff] %v695
        %722 = vst [vmem:[#allocation2 + $0x70] sm:$0xff] %v696
        %723 = vst [vmem:[#allocation2 + $0x78] sm:$0xff] %v697
        %724 = vst [vmem:[#allocation2 + $0x80] sm:$0xff] %v698
        %725 = vst [vmem:[#allocation2 + $0x88] sm:$0xff] %v699
        %726 = vst [vmem:[#allocation2 + $0x90] sm:$0xff] %v700
        %727 = vst [vmem:[#allocation2 + $0x98] sm:$0xff] %v701
        %728 = vst [vmem:[#allocation2 + $0xa0] sm:$0xff] %v702
        %729 = vst [vmem:[#allocation2 + $0xa8] sm:$0xff] %v703
        %730 = vst [vmem:[#allocation2 + $0xb0] sm:$0xff] %v704
        %731 = vst [vmem:[#allocation2 + $0xb8] sm:$0xff] %v705
        %732 = vst [vmem:[#allocation2 + $0xc0] sm:$0xff] %v706
        %733 = vst [vmem:[#allocation2 + $0xc8] sm:$0xff] %v707
        %p734 = scmp.eq.s32.totalorder %s29, 2
        // Predicated region
        $region53: #{tpu_custom_call.1} parent=35 // pred_check
          %p735 = pneg %p734
        $region54: #{tpu_custom_call.1} parent=35 // pred_check_branch
          %737 = sbr.rel (%p735) target = $region56
        $region55: #{tpu_custom_call.1} parent=35 // pred_region
          %v738 = vld [vmem:[#allocation2] sm:$0xff]
          %v739 = vld [vmem:[#allocation2 + $0x8] sm:$0xff]
          %v740 = vld [vmem:[#allocation2 + $0x10] sm:$0xff]
          %v741 = vld [vmem:[#allocation2 + $0x18] sm:$0xff]
          %v742 = vld [vmem:[#allocation2 + $0x20] sm:$0xff]
          %v743 = vld [vmem:[#allocation2 + $0x28] sm:$0xff]
          %v744 = vld [vmem:[#allocation2 + $0x30] sm:$0xff]
          %v745 = vld [vmem:[#allocation2 + $0x38] sm:$0xff]
          %v746 = vld [vmem:[#allocation2 + $0x40] sm:$0xff]
          %v747 = vld [vmem:[#allocation2 + $0x48] sm:$0xff]
          %v748 = vld [vmem:[#allocation2 + $0x50] sm:$0xff]
          %v749 = vld [vmem:[#allocation2 + $0x58] sm:$0xff]
          %v750 = vld [vmem:[#allocation2 + $0x60] sm:$0xff]
          %v751 = vld [vmem:[#allocation2 + $0x68] sm:$0xff]
          %v752 = vld [vmem:[#allocation2 + $0x70] sm:$0xff]
          %v753 = vld [vmem:[#allocation2 + $0x78] sm:$0xff]
          %v754 = vld [vmem:[#allocation2 + $0x80] sm:$0xff]
          %v755 = vld [vmem:[#allocation2 + $0x88] sm:$0xff]
          %v756 = vld [vmem:[#allocation2 + $0x90] sm:$0xff]
          %v757 = vld [vmem:[#allocation2 + $0x98] sm:$0xff]
          %v758 = vld [vmem:[#allocation2 + $0xa0] sm:$0xff]
          %v759 = vld [vmem:[#allocation2 + $0xa8] sm:$0xff]
          %v760 = vld [vmem:[#allocation2 + $0xb0] sm:$0xff]
          %v761 = vld [vmem:[#allocation2 + $0xb8] sm:$0xff]
          %v762 = vld [vmem:[#allocation2 + $0xc0] sm:$0xff]
          %v763 = vld [vmem:[#allocation2 + $0xc8] sm:$0xff]
          %v764 = vld [vmem:[%s317] sm:$0x1]
          %v766 = vlaneseq
          %v767 = vshrl.u32 %v766, 7
          %v768 = vsub.s32 0, %v767
          %v769 = vrot.slane %v764, %v768
          %v771 = vadd.f32 %v738, %v769
          %v772 = vadd.f32 %v739, %v769
          %v773 = vadd.f32 %v740, %v769
          %v774 = vadd.f32 %v741, %v769
          %v775 = vadd.f32 %v742, %v769
          %v776 = vadd.f32 %v743, %v769
          %v777 = vadd.f32 %v744, %v769
          %v778 = vadd.f32 %v745, %v769
          %v779 = vadd.f32 %v746, %v769
          %v780 = vadd.f32 %v747, %v769
          %v781 = vadd.f32 %v748, %v769
          %v782 = vadd.f32 %v749, %v769
          %v783 = vadd.f32 %v750, %v769
          %v784 = vadd.f32 %v751, %v769
          %v785 = vadd.f32 %v752, %v769
          %v786 = vadd.f32 %v753, %v769
          %v787 = vadd.f32 %v754, %v769
          %v788 = vadd.f32 %v755, %v769
          %v789 = vadd.f32 %v756, %v769
          %v790 = vadd.f32 %v757, %v769
          %v791 = vadd.f32 %v758, %v769
          %v792 = vadd.f32 %v759, %v769
          %v793 = vadd.f32 %v760, %v769
          %v794 = vadd.f32 %v761, %v769
          %v795 = vadd.f32 %v762, %v769
          %v796 = vadd.f32 %v763, %v769
          %v797 = vld [vmem:[#allocation8] sm:$0xff]
          %v798 = vld [vmem:[#allocation8 + $0x8] sm:$0xff]
          %v799 = vld [vmem:[#allocation8 + $0x10] sm:$0xff]
          %v800 = vld [vmem:[#allocation8 + $0x18] sm:$0xff]
          %v801 = vld [vmem:[#allocation8 + $0x20] sm:$0xff]
          %v802 = vld [vmem:[#allocation8 + $0x28] sm:$0xff]
          %v803 = vld [vmem:[#allocation8 + $0x30] sm:$0xff]
          %v804 = vld [vmem:[#allocation8 + $0x38] sm:$0xff]
          %v805 = vld [vmem:[#allocation8 + $0x40] sm:$0xff]
          %v806 = vld [vmem:[#allocation8 + $0x48] sm:$0xff]
          %v807 = vld [vmem:[#allocation8 + $0x50] sm:$0xff]
          %v808 = vld [vmem:[#allocation8 + $0x58] sm:$0xff]
          %v809 = vld [vmem:[#allocation8 + $0x60] sm:$0xff]
          %v810 = vld [vmem:[#allocation8 + $0x68] sm:$0xff]
          %v811 = vld [vmem:[#allocation8 + $0x70] sm:$0xff]
          %v812 = vld [vmem:[#allocation8 + $0x78] sm:$0xff]
          %v813 = vld [vmem:[#allocation8 + $0x80] sm:$0xff]
          %v814 = vld [vmem:[#allocation8 + $0x88] sm:$0xff]
          %v815 = vld [vmem:[#allocation8 + $0x90] sm:$0xff]
          %v816 = vld [vmem:[#allocation8 + $0x98] sm:$0xff]
          %v817 = vld [vmem:[#allocation8 + $0xa0] sm:$0xff]
          %v818 = vld [vmem:[#allocation8 + $0xa8] sm:$0xff]
          %v819 = vld [vmem:[#allocation8 + $0xb0] sm:$0xff]
          %v820 = vld [vmem:[#allocation8 + $0xb8] sm:$0xff]
          %v821 = vld [vmem:[#allocation8 + $0xc0] sm:$0xff]
          %v822 = vld [vmem:[#allocation8 + $0xc8] sm:$0xff]
          %v823 = vadd.f32 %v771, %v797
          %v824 = vadd.f32 %v772, %v798
          %v825 = vadd.f32 %v773, %v799
          %v826 = vadd.f32 %v774, %v800
          %v827 = vadd.f32 %v775, %v801
          %v828 = vadd.f32 %v776, %v802
          %v829 = vadd.f32 %v777, %v803
          %v830 = vadd.f32 %v778, %v804
          %v831 = vadd.f32 %v779, %v805
          %v832 = vadd.f32 %v780, %v806
          %v833 = vadd.f32 %v781, %v807
          %v834 = vadd.f32 %v782, %v808
          %v835 = vadd.f32 %v783, %v809
          %v836 = vadd.f32 %v784, %v810
          %v837 = vadd.f32 %v785, %v811
          %v838 = vadd.f32 %v786, %v812
          %v839 = vadd.f32 %v787, %v813
          %v840 = vadd.f32 %v788, %v814
          %v841 = vadd.f32 %v789, %v815
          %v842 = vadd.f32 %v790, %v816
          %v843 = vadd.f32 %v791, %v817
          %v844 = vadd.f32 %v792, %v818
          %v845 = vadd.f32 %v793, %v819
          %v846 = vadd.f32 %v794, %v820
          %v847 = vadd.f32 %v795, %v821
          %v848 = vadd.f32 %v796, %v822
          %v849 = vmax.f32 %v823, 0.0
          %v850 = vmax.f32 %v824, 0.0
          %v851 = vmax.f32 %v825, 0.0
          %v852 = vmax.f32 %v826, 0.0
          %v853 = vmax.f32 %v827, 0.0
          %v854 = vmax.f32 %v828, 0.0
          %v855 = vmax.f32 %v829, 0.0
          %v856 = vmax.f32 %v830, 0.0
          %v857 = vmax.f32 %v831, 0.0
          %v858 = vmax.f32 %v832, 0.0
          %v859 = vmax.f32 %v833, 0.0
          %v860 = vmax.f32 %v834, 0.0
          %v861 = vmax.f32 %v835, 0.0
          %v862 = vmax.f32 %v836, 0.0
          %v863 = vmax.f32 %v837, 0.0
          %v864 = vmax.f32 %v838, 0.0
          %v865 = vmax.f32 %v839, 0.0
          %v866 = vmax.f32 %v840, 0.0
          %v867 = vmax.f32 %v841, 0.0
          %v868 = vmax.f32 %v842, 0.0
          %v869 = vmax.f32 %v843, 0.0
          %v870 = vmax.f32 %v844, 0.0
          %v871 = vmax.f32 %v845, 0.0
          %v872 = vmax.f32 %v846, 0.0
          %v873 = vmax.f32 %v847, 0.0
          %v874 = vmax.f32 %v848, 0.0
          %875 = vst [vmem:[#allocation9] sm:$0xff] %v849
          %876 = vst [vmem:[#allocation9 + $0x8] sm:$0xff] %v850
          %877 = vst [vmem:[#allocation9 + $0x10] sm:$0xff] %v851
          %878 = vst [vmem:[#allocation9 + $0x18] sm:$0xff] %v852
          %879 = vst [vmem:[#allocation9 + $0x20] sm:$0xff] %v853
          %880 = vst [vmem:[#allocation9 + $0x28] sm:$0xff] %v854
          %881 = vst [vmem:[#allocation9 + $0x30] sm:$0xff] %v855
          %882 = vst [vmem:[#allocation9 + $0x38] sm:$0xff] %v856
          %883 = vst [vmem:[#allocation9 + $0x40] sm:$0xff] %v857
          %884 = vst [vmem:[#allocation9 + $0x48] sm:$0xff] %v858
          %885 = vst [vmem:[#allocation9 + $0x50] sm:$0xff] %v859
          %886 = vst [vmem:[#allocation9 + $0x58] sm:$0xff] %v860
          %887 = vst [vmem:[#allocation9 + $0x60] sm:$0xff] %v861
          %888 = vst [vmem:[#allocation9 + $0x68] sm:$0xff] %v862
          %889 = vst [vmem:[#allocation9 + $0x70] sm:$0xff] %v863
          %890 = vst [vmem:[#allocation9 + $0x78] sm:$0xff] %v864
          %891 = vst [vmem:[#allocation9 + $0x80] sm:$0xff] %v865
          %892 = vst [vmem:[#allocation9 + $0x88] sm:$0xff] %v866
          %893 = vst [vmem:[#allocation9 + $0x90] sm:$0xff] %v867
          %894 = vst [vmem:[#allocation9 + $0x98] sm:$0xff] %v868
          %895 = vst [vmem:[#allocation9 + $0xa0] sm:$0xff] %v869
          %896 = vst [vmem:[#allocation9 + $0xa8] sm:$0xff] %v870
          %897 = vst [vmem:[#allocation9 + $0xb0] sm:$0xff] %v871
          %898 = vst [vmem:[#allocation9 + $0xb8] sm:$0xff] %v872
          %899 = vst [vmem:[#allocation9 + $0xc0] sm:$0xff] %v873
          %900 = vst [vmem:[#allocation9 + $0xc8] sm:$0xff] %v874
        $region56: #{tpu_custom_call.1} parent=35 // pred_fallthru
          _
        // Predicated region
        $region57: #{tpu_custom_call.1} parent=35 // pred_check
          %p901 = pneg %p171
        $region58: #{tpu_custom_call.1} parent=35 // pred_check_branch
          %903 = sbr.rel (%p901) target = $region60
        $region59: #{tpu_custom_call.1} parent=35 // pred_region
          %s904 = smul.u32 26, %s27
          %s906 = ssub.s32 3328, 3328
          %907 = vsyncadd [#allocation5], %s906
          %s908 = sadd.s32 %s28, %s904
          %s909 = smul.addr %s908, 128
          %s910 = scalar_lea.hbm %s4, %s909
          %s911 = sshll.u32 [#allocation9], 4
          %s912 = int_to_ptr.vmem [resolvable:$true] %s911
          %917 = dma.vmem_to_hbm [thread:$0]  %s912, 3328, %s910, [#allocation5], 128, 128, 8
        $region60: #{tpu_custom_call.1} parent=35 // pred_fallthru
          _
        // Predicated region
        $region61: #{tpu_custom_call.1} parent=35 // pred_check
          %p918 = pneg %p171
        $region62: #{tpu_custom_call.1} parent=35 // pred_check_branch
          %920 = sbr.rel (%p918) target = $region64
        $region63: #{tpu_custom_call.1} parent=35 // pred_region
          %921 = dma.done [#allocation5], 3328
        $region64: #{tpu_custom_call.1} parent=35 // pred_fallthru
          _
      $region36: #{tpu_custom_call.1} parent=5 // pred_fallthru
        _
      %p922 = scmp.le.s32.totalorder 2, %s17
      // Predicated region
      $region65: #{tpu_custom_call.1} parent=5 // pred_check
        %p923 = pneg %p922
      $region66: #{tpu_custom_call.1} parent=5 // pred_check_branch
        %925 = sbr.rel (%p923) target = $region68
      $region67: #{tpu_custom_call.1} parent=5 // pred_region
        %s926 = ssub.s32 %s17, 2
      $region68: #{tpu_custom_call.1} parent=5 // pred_fallthru
        _
    $region6: #{tpu_custom_call.1} parent=1 // loop_footer
      %s21 = sadd.s32 1, %s17
    $region7: #{tpu_custom_call.1} parent=1 // loop_footer_branch
      %16 = sbr.rel target = $region3
    $region8: #{tpu_custom_call.1} parent=1 // loop_exit
      _
    %927 = vsyncpa [#allocation4], 1
    %s928 = scalar_lea.sflag [#allocation4], 1
    %929 = vsyncpa %s928, 1
    %930 = vsyncpa [#allocation7], 1
    %s931 = scalar_lea.sflag [#allocation7], 1
    %932 = vsyncpa %s931, 1
    %933 = vsyncpa [#allocation5], 1
    %s934 = scalar_lea.sflag [#allocation5], 1
    %935 = vsyncpa %s934, 1

</llo_original>
